<compile_context>
chip_gen: v5e
topology: v5e:2x2
jax: 0.10.0
libtpu: 0.0.40
codegen_flags: <defaults>
</compile_context>

<pallas_src>
from functools import partial

import numpy as np
import jax
import jax.numpy as jnp
from jax.experimental import pallas as pl
from jax.experimental.pallas import tpu as pltpu


def _round_up(n, m):
    return ((n + m - 1) // m) * m


# ----------------------------------------------------------------------------
# Pallas kernel: fused (block-diagonal) 2-layer MLP over a tile of N rows.
# ----------------------------------------------------------------------------
def _fused_mlp_kernel(x_ref, w1_ref, b1_ref, w2_ref, b2_ref, o_ref):
    # x_ref:  (TN, JD)  f32       w1_ref: (JD, JD)  bf16   b1_ref: (1, JD)  f32
    # w2_ref: (JD, OUT) bf16      b2_ref: (1, OUT)  f32    o_ref:  (TN, OUT) bf16
    x = x_ref[...].astype(jnp.bfloat16)                      # in-kernel cast (VPU, hidden under DMA)
    h = jnp.dot(x, w1_ref[...], preferred_element_type=jnp.float32) + b1_ref[...]
    h = jnp.maximum(h, 0.0).astype(jnp.bfloat16)             # ReLU, back to bf16 for MXU
    y = jnp.dot(h, w2_ref[...], preferred_element_type=jnp.float32) + b2_ref[...]
    o_ref[...] = y.astype(o_ref.dtype)                       # bf16 writeback


def _choose_tile(N, tile_n):
    """Pick a row-tile size that minimizes padding and gives >=2 grid programs
    (so v7x's 2 TensorCores both get work) whenever N is large enough."""
    min_tiles = 2 if N > 16 else 1
    n_tiles = max(pl.cdiv(N, tile_n), min_tiles)
    tn = _round_up(pl.cdiv(N, n_tiles), 16)
    n_pad = _round_up(N, tn)
    return tn, n_pad


def fused_mlp(x, w1, b1, w2, b2, *, tile_n=4096):
    """x: [N, JD] (f32) -> [n_pad, OUT] (bf16), N tiled along a parallel grid axis."""
    N, JD = x.shape
    OUT = w2.shape[-1]
    tn, n_pad = _choose_tile(N, tile_n)
    if n_pad != N:
        x = jnp.pad(x, ((0, n_pad - N), (0, 0)))

    out = pl.pallas_call(
        _fused_mlp_kernel,
        out_shape=jax.ShapeDtypeStruct((n_pad, OUT), jnp.bfloat16),
        grid_spec=pltpu.PrefetchScalarGridSpec(
            num_scalar_prefetch=0,
            grid=(n_pad // tn,),
            in_specs=[
                pl.BlockSpec((tn, JD), lambda i: (i, 0)),    # x tile (f32)
                pl.BlockSpec((JD, JD), lambda i: (0, 0)),    # W1' (grid-invariant, bf16)
                pl.BlockSpec((1, JD), lambda i: (0, 0)),     # b1' (f32)
                pl.BlockSpec((JD, OUT), lambda i: (0, 0)),   # W2' (grid-invariant, bf16)
                pl.BlockSpec((1, OUT), lambda i: (0, 0)),    # b2' (f32)
            ],
            out_specs=pl.BlockSpec((tn, OUT), lambda i: (i, 0)),
        ),
        compiler_params=pltpu.CompilerParams(
            dimension_semantics=("parallel",),               # shard N tiles across TCs (v7x)
            vmem_limit_bytes=32 * 1024 * 1024,               # ~7 MiB working set @ tn=4096
        ),
    )(x, w1, b1, w2, b2)
    return out                                               # padded slab; consumer slices inside jit


# ----------------------------------------------------------------------------
# Host-side (one-time) parameter fusion: block-diagonal W1', column-permuted W2'.
# ----------------------------------------------------------------------------
def motion_column_map(J, contact_joints):
    """Column position in the final motion vector for each joint output."""
    C = len(contact_joints)
    ric0 = 4
    rot0 = ric0 + (J - 1) * 3
    rootvel0 = rot0 + (J - 1) * 6          # root[4:7]
    vel0 = rootvel0 + 3
    con0 = vel0 + (J - 1) * 3
    motion_dim = con0 + C
    cols = []
    for i in range(J):
        if i == 0:
            c = [0, 1, 2, 3, rootvel0, rootvel0 + 1, rootvel0 + 2]
        else:
            j = i - 1
            c = ([ric0 + j * 3 + k for k in range(3)]
                 + [rot0 + j * 6 + k for k in range(6)]
                 + [vel0 + j * 3 + k for k in range(3)])
        cols.append(c)
    contact_cols = [con0 + ci for ci in range(C)]
    return cols, contact_cols, motion_dim


def build_fused_params(w1_list, b1_list, w2_list, b2_list, contact_joints):
    """Per-joint weights (stored [in, out], transposed vs nn.Linear) -> fused slabs."""
    J = len(w1_list)
    D = int(w1_list[0].shape[0])
    assert 0 not in contact_joints, "root joint cannot be a contact joint"
    assert all(0 < ci < J for ci in contact_joints), "contact joint index out of range"
    cols, ccols, motion_dim = motion_column_map(J, contact_joints)
    JD = J * D
    jd_pad = _round_up(JD, 128)
    out_pad = _round_up(max(motion_dim, 128), 128)
    # TODO(synk): for large rigs (J*D >> 256) the block-diagonal W1' wastes MACs
    # as J^2; switch to a per-joint grid axis / batched [J,D,D] formulation there.

    w1f = np.zeros((jd_pad, jd_pad), np.float32)
    b1f = np.zeros((1, jd_pad), np.float32)
    w2f = np.zeros((jd_pad, out_pad), np.float32)
    b2f = np.zeros((1, out_pad), np.float32)

    for i in range(J):
        r0 = i * D
        w1f[r0:r0 + D, r0:r0 + D] = np.asarray(w1_list[i])
        b1f[0, r0:r0 + D] = np.asarray(b1_list[i])
        w2i = np.asarray(w2_list[i])
        b2i = np.asarray(b2_list[i])
        for k, col in enumerate(cols[i]):
            w2f[r0:r0 + D, col] = w2i[:, k]
            b2f[0, col] = b2i[k]
    # contact joints: their *last* output column also lands in the contact block
    for ci, i in enumerate(contact_joints):
        r0 = i * D
        w2i = np.asarray(w2_list[i])
        b2i = np.asarray(b2_list[i])
        k = w2i.shape[1] - 1
        w2f[r0:r0 + D, ccols[ci]] = w2i[:, k]
        b2f[0, ccols[ci]] = b2i[k]

    return dict(
        w1=jnp.asarray(w1f, jnp.bfloat16),
        b1=jnp.asarray(b1f, jnp.float32),
        w2=jnp.asarray(w2f, jnp.bfloat16),
        b2=jnp.asarray(b2f, jnp.float32),
        motion_dim=motion_dim,
        jd=JD, jd_pad=jd_pad, out_pad=out_pad,
    )


# ----------------------------------------------------------------------------
# Forward wrapper.  Everything (pad, kernel, slice, reshape) lives in one jit
# so XLA fuses the final trim into the consumer instead of a standalone copy.
# ----------------------------------------------------------------------------
@partial(jax.jit, static_argnames=("motion_dim", "jd_pad", "tile_n"))
def _forward_jit(x, w1, b1, w2, b2, *, motion_dim, jd_pad, tile_n):
    B, T, J, D = x.shape
    N = B * T
    JD = J * D
    x2 = x.reshape(N, JD)                                    # f32; bf16 cast happens in-kernel
    if jd_pad != JD:
        x2 = jnp.pad(x2, ((0, 0), (0, jd_pad - JD)))
    out = fused_mlp(x2, w1, b1, w2, b2, tile_n=tile_n)       # [n_pad, out_pad] bf16
    # Output lanes already sit in final motion order: slice + reshape (fused in jit).
    return out[:N, :motion_dim].reshape(B, T, motion_dim)


def motion_decoder_forward(x, fused, *, tile_n=4096):
    """x: [B, T, J, D] -> motion: [B, T, 7 + (J-1)*12 + C]  (bfloat16)."""
    return _forward_jit(
        x, fused["w1"], fused["b1"], fused["w2"], fused["b2"],
        motion_dim=fused["motion_dim"], jd_pad=fused["jd_pad"], tile_n=tile_n)


# ----------------------------------------------------------------------------
# Pure-JAX reference, mirroring the PyTorch forward (with the same bf16 casts
# the kernel applies, f32 accumulation).
# ----------------------------------------------------------------------------
def reference_forward(x, w1_list, b1_list, w2_list, b2_list, contact_joints):
    B, T, J, D = x.shape
    q = lambda a: a.astype(jnp.bfloat16).astype(jnp.float32)
    hp = jax.lax.Precision.HIGHEST
    outs = []
    for i in range(J):
        xi = q(x[:, :, i])
        h = jnp.matmul(xi, q(w1_list[i]), precision=hp) + b1_list[i]
        h = q(jnp.maximum(h, 0.0))
        y = jnp.matmul(h, q(w2_list[i]), precision=hp) + b2_list[i]
        outs.append(y)
    root = outs[0]
    ric = jnp.stack([outs[i][:, :, 0:3] for i in range(1, J)], axis=2).reshape(B, T, (J - 1) * 3)
    rot = jnp.stack([outs[i][:, :, 3:9] for i in range(1, J)], axis=2).reshape(B, T, (J - 1) * 6)
    vel = jnp.stack([outs[i][:, :, 9:12] for i in range(1, J)], axis=2).reshape(B, T, (J - 1) * 3)
    contact = jnp.stack([outs[i][:, :, -1] for i in contact_joints], axis=2).reshape(
        B, T, len(contact_joints))
    return jnp.concatenate(
        [root[..., :4], ric, rot,
         jnp.concatenate([root[..., 4:], vel], axis=-1), contact],
        axis=-1)


if __name__ == "__main__":
    # Small synthetic config (opt): pose_dim=47 -> joints_num = (47+1)//12 = 4
    pose_dim = 47
    latent_dim = 32
    contact_joints = (2, 3)
    B, T = 2, 16

    J = (pose_dim + 1) // 12
    D = latent_dim
    out_dims = [7 if i == 0 else (13 if i in contact_joints else 12) for i in range(J)]

    key = jax.random.PRNGKey(0)
    keys = jax.random.split(key, 1 + 4 * J)
    x = jax.random.normal(keys[0], (B, T, J, D), dtype=jnp.float32)

    w1_list, b1_list, w2_list, b2_list = [], [], [], []
    ki = 1
    for i in range(J):
        w1_list.append(jax.random.normal(keys[ki], (D, D), dtype=jnp.float32) / jnp.sqrt(D)); ki += 1
        b1_list.append(jax.random.normal(keys[ki], (D,), dtype=jnp.float32) * 0.01); ki += 1
        w2_list.append(jax.random.normal(keys[ki], (D, out_dims[i]), dtype=jnp.float32) / jnp.sqrt(D)); ki += 1
        b2_list.append(jax.random.normal(keys[ki], (out_dims[i],), dtype=jnp.float32) * 0.01); ki += 1

    fused = build_fused_params(w1_list, b1_list, w2_list, b2_list, contact_joints)

    motion = motion_decoder_forward(x, fused)
    motion = jax.block_until_ready(motion)

    expected_dim = 4 + 3 + (J - 1) * 12 + len(contact_joints)
    assert motion.shape == (B, T, expected_dim), motion.shape
    assert motion.dtype == jnp.bfloat16, motion.dtype

    ref = reference_forward(x, w1_list, b1_list, w2_list, b2_list, contact_joints)
    # Kernel output is bf16 (f32 accumulation); compare with bf16-level tolerance.
    np.testing.assert_allclose(np.asarray(motion, dtype=np.float32), np.asarray(ref),
                               rtol=1.5e-2, atol=1.5e-2)

    print("KERNEL_OK")
</pallas_src>

<mosaic_0001>
module attributes {stable_mosaic.version = 11 : i64} {
  func.func @_fused_mlp_kernel(%arg0: i32, %arg1: memref<16x128xf32, #tpu.memory_space<vmem>>, %arg2: memref<128x128xbf16, #tpu.memory_space<vmem>>, %arg3: memref<1x128xf32, #tpu.memory_space<vmem>>, %arg4: memref<128x128xbf16, #tpu.memory_space<vmem>>, %arg5: memref<1x128xf32, #tpu.memory_space<vmem>>, %arg6: memref<16x128xbf16, #tpu.memory_space<vmem>>) attributes {dimension_semantics = [#tpu.dimension_semantics<parallel>], iteration_bounds = array<i64: 2>, scalar_prefetch = 0 : i64, scratch_operands = 0 : i64, tpu.core_type = #tpu.core_type<tc>, window_params = [{transform_indices = @transform_0, window_bounds = array<i64: 16, 128>}, {pipeline_mode = #tpu.pipeline_mode<synchronous>, transform_indices = @transform_1, window_bounds = array<i64: 128, 128>}, {pipeline_mode = #tpu.pipeline_mode<synchronous>, transform_indices = @transform_2, window_bounds = array<i64: 1, 128>}, {pipeline_mode = #tpu.pipeline_mode<synchronous>, transform_indices = @transform_3, window_bounds = array<i64: 128, 128>}, {pipeline_mode = #tpu.pipeline_mode<synchronous>, transform_indices = @transform_4, window_bounds = array<i64: 1, 128>}, {transform_indices = @transform_5, window_bounds = array<i64: 16, 128>}]} {
    %c0 = arith.constant 0 : index
    %c0_0 = arith.constant 0 : index
    %0 = vector.load %arg1[%c0, %c0_0] : memref<16x128xf32, #tpu.memory_space<vmem>>, vector<16x128xf32>
    %1 = arith.truncf %0 : vector<16x128xf32> to vector<16x128xbf16>
    %c0_1 = arith.constant 0 : index
    %c0_2 = arith.constant 0 : index
    %2 = vector.load %arg2[%c0_1, %c0_2] : memref<128x128xbf16, #tpu.memory_space<vmem>>, vector<128x128xbf16>
    %cst = arith.constant dense<0.000000e+00> : vector<16x128xf32>
    %3 = tpu.matmul %1, %2, %cst {dimension_numbers = #tpu.dot_dimension_numbers<[1], [0], [0], [1], [0, 0, 1, 1], [], []>} : vector<16x128xbf16>, vector<128x128xbf16>, vector<16x128xf32> -> vector<16x128xf32>
    %c0_3 = arith.constant 0 : index
    %c0_4 = arith.constant 0 : index
    %4 = vector.load %arg3[%c0_3, %c0_4] : memref<1x128xf32, #tpu.memory_space<vmem>>, vector<1x128xf32>
    %5 = vector.broadcast %4 : vector<1x128xf32> to vector<16x128xf32>
    %6 = arith.addf %3, %5 : vector<16x128xf32>
    %cst_5 = arith.constant 0.000000e+00 : f32
    %7 = vector.broadcast %cst_5 : f32 to vector<16x128xf32>
    %8 = arith.maximumf %6, %7 : vector<16x128xf32>
    %9 = arith.truncf %8 : vector<16x128xf32> to vector<16x128xbf16>
    %c0_6 = arith.constant 0 : index
    %c0_7 = arith.constant 0 : index
    %10 = vector.load %arg4[%c0_6, %c0_7] : memref<128x128xbf16, #tpu.memory_space<vmem>>, vector<128x128xbf16>
    %cst_8 = arith.constant dense<0.000000e+00> : vector<16x128xf32>
    %11 = tpu.matmul %9, %10, %cst_8 {dimension_numbers = #tpu.dot_dimension_numbers<[1], [0], [0], [1], [0, 0, 1, 1], [], []>} : vector<16x128xbf16>, vector<128x128xbf16>, vector<16x128xf32> -> vector<16x128xf32>
    %c0_9 = arith.constant 0 : index
    %c0_10 = arith.constant 0 : index
    %12 = vector.load %arg5[%c0_9, %c0_10] : memref<1x128xf32, #tpu.memory_space<vmem>>, vector<1x128xf32>
    %13 = vector.broadcast %12 : vector<1x128xf32> to vector<16x128xf32>
    %14 = arith.addf %11, %13 : vector<16x128xf32>
    %15 = arith.truncf %14 : vector<16x128xf32> to vector<16x128xbf16>
    %c0_11 = arith.constant 0 : index
    %c0_12 = arith.constant 0 : index
    %16 = vector.load %arg6[%c0_11, %c0_12] : memref<16x128xbf16, #tpu.memory_space<vmem>>, vector<16x128xbf16>
    tpu.vector_store %arg6[%c0_11, %c0_12], %15 {strides = array<i32>} : memref<16x128xbf16, #tpu.memory_space<vmem>>, vector<16x128xbf16>,
    return
  }
  func.func @transform_0(%arg0: i32) -> (i32, i32) {
    %c0_i32 = arith.constant 0 : i32
    %c0_i32_0 = arith.constant 0 : i32
    return %arg0, %c0_i32 : i32, i32
  }
  func.func @transform_1(%arg0: i32) -> (i32, i32) {
    %c0_i32 = arith.constant 0 : i32
    %c0_i32_0 = arith.constant 0 : i32
    %c0_i32_1 = arith.constant 0 : i32
    return %c0_i32, %c0_i32_0 : i32, i32
  }
  func.func @transform_2(%arg0: i32) -> (i32, i32) {
    %c0_i32 = arith.constant 0 : i32
    %c0_i32_0 = arith.constant 0 : i32
    %c0_i32_1 = arith.constant 0 : i32
    return %c0_i32, %c0_i32_0 : i32, i32
  }
  func.func @transform_3(%arg0: i32) -> (i32, i32) {
    %c0_i32 = arith.constant 0 : i32
    %c0_i32_0 = arith.constant 0 : i32
    %c0_i32_1 = arith.constant 0 : i32
    return %c0_i32, %c0_i32_0 : i32, i32
  }
  func.func @transform_4(%arg0: i32) -> (i32, i32) {
    %c0_i32 = arith.constant 0 : i32
    %c0_i32_0 = arith.constant 0 : i32
    %c0_i32_1 = arith.constant 0 : i32
    return %c0_i32, %c0_i32_0 : i32, i32
  }
  func.func @transform_5(%arg0: i32) -> (i32, i32) {
    %c0_i32 = arith.constant 0 : i32
    %c0_i32_0 = arith.constant 0 : i32
    return %arg0, %c0_i32 : i32, i32
  }
}

</mosaic_0001>

<llo_original>
// kernel: _forward_jit.1
$region0: #{_forward_jit.1}
  #allocation0 [shape = 'u32[]', space=smem, size = 0x4, offset = 0x4, fixed_abs, tag = 'smem constant byte address 0x4 - core index']
  #allocation1 [shape = 'u32[72,128]{1,0:T(1,128)}', space=vmem, size = 0x9000, scoped, tag = 'internal scratch']
  %s0 = inlined_call_operand.vmem [shape: f32[32,128], index: 0, kind: input, shape index: {}]
  %s1 = inlined_call_operand.vmem [shape: bf16[128,128], index: 1, kind: input, shape index: {}]
  %s2 = inlined_call_operand.vmem [shape: f32[1,128], index: 2, kind: input, shape index: {}]
  %s3 = inlined_call_operand.vmem [shape: bf16[128,128], index: 3, kind: input, shape index: {}]
  %s4 = inlined_call_operand.vmem [shape: f32[1,128], index: 4, kind: input, shape index: {}]
  %s5 = inlined_call_operand.hbm [shape: bf16[32,128], index: 5, kind: output, shape index: {}]
  %s6 = sld [smem:[#allocation0]]
  $region53: #{_forward_jit.1} parent=0
    _
  %s8 = ssub.s32 1, %s6
  %s9 = scalar_select 0, %s8, %s6
  $region1: #{_forward_jit.1} parent=0
    #allocation2 [shape = 'u8[8192]{0}', space=vmem, size = 0x2000, scoped, tag = 'output window, operand 0']
    #allocation3 [shape = 's32[2]{0}', space=sflag, size = 0x8, scoped, tag = 'scoped memory for _forward_jit.1']
    %10 = vsyncpa [#allocation3], 0
    %s11 = scalar_lea.sflag [#allocation3], 1
    %12 = vsyncpa %s11, 0
    loop: start=0, step=1, limit=4
    $region2: #{_forward_jit.1} parent=1 // loop_pre_header
      _
    $region3: #{_forward_jit.1} parent=1 // loop_header
      %s14 = sphi 0, %s18
      %p15 = scmp.ge.s32.totalorder %s14, 4
      %s24 = sphi 0, %s26
      %s27 = sphi 0, %s24
      %s28 = sphi 0, %s27
      %s44 = sphi 0, %s28
      %s48 = sphi 0, %s48
      %s50 = sphi 0, %s48
      %s51 = sphi 0, %s50
      %s65 = sphi 0, %s51
      %s69 = sphi 0, %s69
      %s71 = sphi 0, %s69
      %s72 = sphi 0, %s71
      %s86 = sphi 0, %s72
      %s90 = sphi 0, %s90
      %s92 = sphi 0, %s90
      %s93 = sphi 0, %s92
      %s107 = sphi 0, %s93
      %s111 = sphi 0, %s111
      %s113 = sphi 0, %s111
      %s114 = sphi 0, %s113
      %s128 = sphi 0, %s114
      %s134 = sphi 0, %s136
      %s137 = sphi 0, %s134
      %s138 = sphi 0, %s137
      %s154 = sphi 0, %s138
    $region4: #{_forward_jit.1} parent=1 // loop_header_branch
      %17 = sbr.rel (%p15) target = $region8
    $region5: #{_forward_jit.1} parent=1 // loop_body
      %s19 = ssub.s32 %s14, 1
      %s20 = ssub.s32 %s14, 2
      %s21 = sadd.s32 %s14, 1
      %s22 = ssub.s32 %s14, %s21
      %p23 = scmp.eq.s32.totalorder %s22, 0
      %s25 = sadd.s32 %s24, 1
      %s26 = scalar_select %p23, %s24, %s25
      %p29 = pneg %p23
      %p30 = scmp.eq.s32.totalorder %s14, 1
      %p31 = por %p29, %p30
      %p32 = scmp.ne.s32.totalorder %s24, %s27
      %p33 = scmp.eq.s32.totalorder %s14, 0
      %p34 = por %p32, %p33
      %p35 = scmp.ne.s32.totalorder %s24, %s27
      %p36 = scmp.eq.s32.totalorder %s19, 1
      %p37 = por %p35, %p36
      %p38 = scmp.ne.s32.totalorder %s27, %s28
      %p39 = scmp.eq.s32.totalorder %s19, 0
      %p40 = por %p38, %p39
      %p41 = scmp.ne.s32.totalorder %s27, %s28
      %p42 = scmp.eq.s32.totalorder %s20, 1
      %p43 = por %p41, %p42
      %p45 = scmp.ne.s32.totalorder %s28, %s44
      %p46 = scmp.eq.s32.totalorder %s20, 0
      %p47 = por %p45, %p46
      %s49 = sadd.s32 %s48, 1
      %p52 = scmp.eq.s32.totalorder %s14, 1
      %p53 = scmp.ne.s32.totalorder %s48, %s50
      %p54 = scmp.eq.s32.totalorder %s14, 0
      %p55 = por %p53, %p54
      %p56 = scmp.ne.s32.totalorder %s48, %s50
      %p57 = scmp.eq.s32.totalorder %s19, 1
      %p58 = por %p56, %p57
      %p59 = scmp.ne.s32.totalorder %s50, %s51
      %p60 = scmp.eq.s32.totalorder %s19, 0
      %p61 = por %p59, %p60
      %p62 = scmp.ne.s32.totalorder %s50, %s51
      %p63 = scmp.eq.s32.totalorder %s20, 1
      %p64 = por %p62, %p63
      %p66 = scmp.ne.s32.totalorder %s51, %s65
      %p67 = scmp.eq.s32.totalorder %s20, 0
      %p68 = por %p66, %p67
      %s70 = sadd.s32 %s69, 1
      %p73 = scmp.eq.s32.totalorder %s14, 1
      %p74 = scmp.ne.s32.totalorder %s69, %s71
      %p75 = scmp.eq.s32.totalorder %s14, 0
      %p76 = por %p74, %p75
      %p77 = scmp.ne.s32.totalorder %s69, %s71
      %p78 = scmp.eq.s32.totalorder %s19, 1
      %p79 = por %p77, %p78
      %p80 = scmp.ne.s32.totalorder %s71, %s72
      %p81 = scmp.eq.s32.totalorder %s19, 0
      %p82 = por %p80, %p81
      %p83 = scmp.ne.s32.totalorder %s71, %s72
      %p84 = scmp.eq.s32.totalorder %s20, 1
      %p85 = por %p83, %p84
      %p87 = scmp.ne.s32.totalorder %s72, %s86
      %p88 = scmp.eq.s32.totalorder %s20, 0
      %p89 = por %p87, %p88
      %s91 = sadd.s32 %s90, 1
      %p94 = scmp.eq.s32.totalorder %s14, 1
      %p95 = scmp.ne.s32.totalorder %s90, %s92
      %p96 = scmp.eq.s32.totalorder %s14, 0
      %p97 = por %p95, %p96
      %p98 = scmp.ne.s32.totalorder %s90, %s92
      %p99 = scmp.eq.s32.totalorder %s19, 1
      %p100 = por %p98, %p99
      %p101 = scmp.ne.s32.totalorder %s92, %s93
      %p102 = scmp.eq.s32.totalorder %s19, 0
      %p103 = por %p101, %p102
      %p104 = scmp.ne.s32.totalorder %s92, %s93
      %p105 = scmp.eq.s32.totalorder %s20, 1
      %p106 = por %p104, %p105
      %p108 = scmp.ne.s32.totalorder %s93, %s107
      %p109 = scmp.eq.s32.totalorder %s20, 0
      %p110 = por %p108, %p109
      %s112 = sadd.s32 %s111, 1
      %p115 = scmp.eq.s32.totalorder %s14, 1
      %p116 = scmp.ne.s32.totalorder %s111, %s113
      %p117 = scmp.eq.s32.totalorder %s14, 0
      %p118 = por %p116, %p117
      %p119 = scmp.ne.s32.totalorder %s111, %s113
      %p120 = scmp.eq.s32.totalorder %s19, 1
      %p121 = por %p119, %p120
      %p122 = scmp.ne.s32.totalorder %s113, %s114
      %p123 = scmp.eq.s32.totalorder %s19, 0
      %p124 = por %p122, %p123
      %p125 = scmp.ne.s32.totalorder %s113, %s114
      %p126 = scmp.eq.s32.totalorder %s20, 1
      %p127 = por %p125, %p126
      %p129 = scmp.ne.s32.totalorder %s114, %s128
      %p130 = scmp.eq.s32.totalorder %s20, 0
      %p131 = por %p129, %p130
      %s132 = ssub.s32 %s14, %s21
      %p133 = scmp.eq.s32.totalorder %s132, 0
      %s135 = sadd.s32 %s134, 1
      %s136 = scalar_select %p133, %s134, %s135
      %p139 = pneg %p133
      %p140 = scmp.eq.s32.totalorder %s14, 1
      %p141 = por %p139, %p140
      %p142 = scmp.ne.s32.totalorder %s134, %s137
      %p143 = scmp.eq.s32.totalorder %s14, 0
      %p144 = por %p142, %p143
      %p145 = scmp.ne.s32.totalorder %s134, %s137
      %p146 = scmp.eq.s32.totalorder %s19, 1
      %p147 = por %p145, %p146
      %p148 = scmp.ne.s32.totalorder %s137, %s138
      %p149 = scmp.eq.s32.totalorder %s19, 0
      %p150 = por %p148, %p149
      %p151 = scmp.ne.s32.totalorder %s137, %s138
      %p152 = scmp.eq.s32.totalorder %s20, 1
      %p153 = por %p151, %p152
      %p155 = scmp.ne.s32.totalorder %s138, %s154
      %p156 = scmp.eq.s32.totalorder %s20, 0
      %p157 = por %p155, %p156
      %p158 = scmp.le.s32.totalorder 1, %s14
      %p159 = scmp.lt.s32.totalorder %s14, 3
      %p160 = pnand %p158, %p159
      %p161 = pneg %p160
      // Predicated region
      $region9: #{_forward_jit.1} parent=5 // pred_check
        _
      $region10: #{_forward_jit.1} parent=5 // pred_check_branch
        %163 = sbr.rel (%p160) target = $region12
      $region11: #{_forward_jit.1} parent=5 // pred_region
        %s164 = ssub.s32 %s14, 1
        // Predicated region
        $region13: #{_forward_jit.1} parent=11 // pred_check
          %p165 = pneg %p61
        $region14: #{_forward_jit.1} parent=11 // pred_check_branch
          %167 = sbr.rel (%p165) target = $region16
        $region15: #{_forward_jit.1} parent=11 // pred_region
          _
        $region16: #{_forward_jit.1} parent=11 // pred_fallthru
          _
        // Predicated region
        $region17: #{_forward_jit.1} parent=11 // pred_check
          %p168 = pneg %p82
        $region18: #{_forward_jit.1} parent=11 // pred_check_branch
          %170 = sbr.rel (%p168) target = $region20
        $region19: #{_forward_jit.1} parent=11 // pred_region
          _
        $region20: #{_forward_jit.1} parent=11 // pred_fallthru
          _
        // Predicated region
        $region21: #{_forward_jit.1} parent=11 // pred_check
          %p171 = pneg %p103
        $region22: #{_forward_jit.1} parent=11 // pred_check_branch
          %173 = sbr.rel (%p171) target = $region24
        $region23: #{_forward_jit.1} parent=11 // pred_region
          _
        $region24: #{_forward_jit.1} parent=11 // pred_fallthru
          _
        // Predicated region
        $region25: #{_forward_jit.1} parent=11 // pred_check
          %p174 = pneg %p124
        $region26: #{_forward_jit.1} parent=11 // pred_check_branch
          %176 = sbr.rel (%p174) target = $region28
        $region27: #{_forward_jit.1} parent=11 // pred_region
          _
        $region28: #{_forward_jit.1} parent=11 // pred_fallthru
          _
      $region12: #{_forward_jit.1} parent=5 // pred_fallthru
        _
      %p177 = scmp.lt.s32.totalorder %s14, 2
      // Predicated region
      $region29: #{_forward_jit.1} parent=5 // pred_check
        %p178 = pneg %p177
      $region30: #{_forward_jit.1} parent=5 // pred_check_branch
        %180 = sbr.rel (%p178) target = $region32
      $region31: #{_forward_jit.1} parent=5 // pred_region
        // Predicated region
        $region33: #{_forward_jit.1} parent=31 // pred_check
          %p181 = pneg %p34
        $region34: #{_forward_jit.1} parent=31 // pred_check_branch
          %183 = sbr.rel (%p181) target = $region36
        $region35: #{_forward_jit.1} parent=31 // pred_region
          %s184 = smul.u32 2, %s14
          %p185 = scmp.lt.s32.totalorder %s184, 3
          %s186 = scalar_select %p185, %s184, 3
          %s187 = smul.addr %s186, 8
          %s188 = scalar_lea.vmem %s0, %s187
          %s189 = smul.u32 2, %s14
        $region36: #{_forward_jit.1} parent=31 // pred_fallthru
          _
      $region32: #{_forward_jit.1} parent=5 // pred_fallthru
        _
      %p190 = scmp.le.s32.totalorder 1, %s14
      %p191 = scmp.lt.s32.totalorder %s14, 3
      %p192 = pnand %p190, %p191
      %p193 = pneg %p192
      // Predicated region
      $region37: #{_forward_jit.1} parent=5 // pred_check
        _
      $region38: #{_forward_jit.1} parent=5 // pred_check_branch
        %195 = sbr.rel (%p192) target = $region40
      $region39: #{_forward_jit.1} parent=5 // pred_region
        %s196 = ssub.s32 %s14, 1
        %s197 = smul.u32 2, %s19
        %p198 = scmp.lt.s32.totalorder %s197, 3
        %s199 = scalar_select %p198, %s197, 3
        %s200 = smul.addr %s199, 8
        %s201 = scalar_lea.vmem %s0, %s200
        %p202 = pneg %p40
        %p203 = pneg %p37
        %p204 = pneg %p61
        %p205 = pneg %p58
        %p206 = pneg %p82
        %p207 = pneg %p79
        %p208 = pneg %p103
        %p209 = pneg %p100
        %p210 = pneg %p124
        %p211 = pneg %p121
        %p212 = pneg %p150
        %p213 = pneg %p147
        %s214 = sand.u32 %s137, 1
        %s215 = scalar_lea.sflag [#allocation3], %s214
        %s216 = sand.u32 %s137, 1
        %s217 = smul.addr %s216, 8
        %s218 = scalar_lea.vmem [#allocation2], %s217
        %s219 = smul.u32 2, %s19
        %p220 = scmp.lt.s32.totalorder %s219, 3
        %s221 = scalar_select %p220, %s219, 3
        %s222 = smul.addr %s221, 8
        %s223 = scalar_lea.vmem %s0, %s222
        %s224 = smul.u32 2, %s19
        %s225 = smul.u32 2, %s19
        %v226 = vld [vmem:[%s223] sm:$0xff]
        %v227 = vld [vmem:[%s223 + $0x8] sm:$0xff]
        %v228 = vpack.c.bf16 %v227, %v226
        %v229 = vld [vmem:[%s1] sm:$0xf]
        %v230 = vld [vmem:[%s1 + $0x4] sm:$0xf]
        %v231 = vld [vmem:[%s1 + $0x8] sm:$0xf]
        %v232 = vld [vmem:[%s1 + $0xc] sm:$0xf]
        %v233 = vld [vmem:[%s1 + $0x10] sm:$0xf]
        %v234 = vld [vmem:[%s1 + $0x14] sm:$0xf]
        %v235 = vld [vmem:[%s1 + $0x18] sm:$0xf]
        %v236 = vld [vmem:[%s1 + $0x1c] sm:$0xf]
        %v237 = vld [vmem:[%s1 + $0x20] sm:$0xf]
        %v238 = vld [vmem:[%s1 + $0x24] sm:$0xf]
        %v239 = vld [vmem:[%s1 + $0x28] sm:$0xf]
        %v240 = vld [vmem:[%s1 + $0x2c] sm:$0xf]
        %v241 = vld [vmem:[%s1 + $0x30] sm:$0xf]
        %v242 = vld [vmem:[%s1 + $0x34] sm:$0xf]
        %v243 = vld [vmem:[%s1 + $0x38] sm:$0xf]
        %v244 = vld [vmem:[%s1 + $0x3c] sm:$0xf]
        %v245 = vld [vmem:[%s2] sm:$0x1]
        %v247 = vperm.slane %v245, 0
        %v265 = vunpack.c.l.b16 %v229
        %v266 = vunpack.c.l.b16 %v230
        %v267 = vunpack.c.l.b16 %v231
        %v268 = vunpack.c.l.b16 %v232
        %v269 = vunpack.c.l.b16 %v233
        %v270 = vunpack.c.l.b16 %v234
        %v271 = vunpack.c.l.b16 %v235
        %v272 = vunpack.c.l.b16 %v236
        %v273 = vunpack.c.l.b16 %v237
        %v274 = vunpack.c.l.b16 %v238
        %v275 = vunpack.c.l.b16 %v239
        %v276 = vunpack.c.l.b16 %v240
        %v277 = vunpack.c.l.b16 %v241
        %v278 = vunpack.c.l.b16 %v242
        %v279 = vunpack.c.l.b16 %v243
        %v280 = vunpack.c.l.b16 %v244
        %v281 = vpack.c.b16 %v266, %v265
        %v282 = vpack.c.b16 %v268, %v267
        %v283 = vpack.c.b16 %v270, %v269
        %v284 = vpack.c.b16 %v272, %v271
        %v285 = vpack.c.b16 %v274, %v273
        %v286 = vpack.c.b16 %v276, %v275
        %v287 = vpack.c.b16 %v278, %v277
        %v288 = vpack.c.b16 %v280, %v279
        %297 = vmatpush.bf16.msra.mxu0 %v288
        %298 = vmatpush.bf16.msra.mxu0 %v287
        %299 = vmatpush.bf16.msra.mxu0 %v286
        %300 = vmatpush.bf16.msra.mxu0 %v285
        %301 = vmatpush.bf16.msra.mxu0 %v284
        %302 = vmatpush.bf16.msra.mxu0 %v283
        %303 = vmatpush.bf16.msra.mxu0 %v282
        %304 = vmatpush.bf16.msra.mxu0 %v281
        %305 = vmatmul.bf16.gmra.mxu0 %v228
        %v306 = vpop.f32.mrf.mxu0
        %v307 = vadd.f32 %v247, %v306
        %v308 = vpop.f32.mrf.mxu0
        %v309 = vadd.f32 %v247, %v308
        %310 = vdwg.mxu0
        %v311 = vmax.f32 %v307, 0.0
        %v312 = vmax.f32 %v309, 0.0
        %v313 = vpack.c.bf16 %v312, %v311
        %v314 = vld [vmem:[%s3] sm:$0xf]
        %v315 = vld [vmem:[%s3 + $0x4] sm:$0xf]
        %v316 = vld [vmem:[%s3 + $0x8] sm:$0xf]
        %v317 = vld [vmem:[%s3 + $0xc] sm:$0xf]
        %v318 = vld [vmem:[%s3 + $0x10] sm:$0xf]
        %v319 = vld [vmem:[%s3 + $0x14] sm:$0xf]
        %v320 = vld [vmem:[%s3 + $0x18] sm:$0xf]
        %v321 = vld [vmem:[%s3 + $0x1c] sm:$0xf]
        %v322 = vld [vmem:[%s3 + $0x20] sm:$0xf]
        %v323 = vld [vmem:[%s3 + $0x24] sm:$0xf]
        %v324 = vld [vmem:[%s3 + $0x28] sm:$0xf]
        %v325 = vld [vmem:[%s3 + $0x2c] sm:$0xf]
        %v326 = vld [vmem:[%s3 + $0x30] sm:$0xf]
        %v327 = vld [vmem:[%s3 + $0x34] sm:$0xf]
        %v328 = vld [vmem:[%s3 + $0x38] sm:$0xf]
        %v329 = vld [vmem:[%s3 + $0x3c] sm:$0xf]
        %v330 = vld [vmem:[%s4] sm:$0x1]
        %v332 = vperm.slane %v330, 0
        %v350 = vunpack.c.l.b16 %v314
        %v351 = vunpack.c.l.b16 %v315
        %v352 = vunpack.c.l.b16 %v316
        %v353 = vunpack.c.l.b16 %v317
        %v354 = vunpack.c.l.b16 %v318
        %v355 = vunpack.c.l.b16 %v319
        %v356 = vunpack.c.l.b16 %v320
        %v357 = vunpack.c.l.b16 %v321
        %v358 = vunpack.c.l.b16 %v322
        %v359 = vunpack.c.l.b16 %v323
        %v360 = vunpack.c.l.b16 %v324
        %v361 = vunpack.c.l.b16 %v325
        %v362 = vunpack.c.l.b16 %v326
        %v363 = vunpack.c.l.b16 %v327
        %v364 = vunpack.c.l.b16 %v328
        %v365 = vunpack.c.l.b16 %v329
        %v366 = vpack.c.b16 %v351, %v350
        %v367 = vpack.c.b16 %v353, %v352
        %v368 = vpack.c.b16 %v355, %v354
        %v369 = vpack.c.b16 %v357, %v356
        %v370 = vpack.c.b16 %v359, %v358
        %v371 = vpack.c.b16 %v361, %v360
        %v372 = vpack.c.b16 %v363, %v362
        %v373 = vpack.c.b16 %v365, %v364
        %382 = vmatpush.bf16.msra.mxu0 %v373
        %383 = vmatpush.bf16.msra.mxu0 %v372
        %384 = vmatpush.bf16.msra.mxu0 %v371
        %385 = vmatpush.bf16.msra.mxu0 %v370
        %386 = vmatpush.bf16.msra.mxu0 %v369
        %387 = vmatpush.bf16.msra.mxu0 %v368
        %388 = vmatpush.bf16.msra.mxu0 %v367
        %389 = vmatpush.bf16.msra.mxu0 %v366
        %390 = vmatmul.bf16.gmra.mxu0 %v313
        %v391 = vpop.f32.mrf.mxu0
        %v392 = vadd.f32 %v332, %v391
        %v393 = vpop.f32.mrf.mxu0
        %v394 = vadd.f32 %v332, %v393
        %395 = vdwg.mxu0
        %v396 = vpack.c.bf16 %v392, %v392
        %v397 = vpack.c.bf16 %v394, %v394
        %398 = vst [vmem:[%s218] sm:$0xf] %v396
        %399 = vst [vmem:[%s218 + $0x4] sm:$0xf] %v397
        %s400 = sand.u32 %s137, 1
        %s401 = scalar_lea.sflag [#allocation3], %s400
        %s402 = sand.u32 %s137, 1
        %s403 = smul.addr %s402, 8
        %s404 = scalar_lea.vmem [#allocation2], %s403
        // Predicated region
        $region41: #{_forward_jit.1} parent=39 // pred_check
          %p405 = pneg %p147
        $region42: #{_forward_jit.1} parent=39 // pred_check_branch
          %407 = sbr.rel (%p405) target = $region44
        $region43: #{_forward_jit.1} parent=39 // pred_region
          %s408 = smul.u32 2, %s19
          %410 = vsyncadd %s401, 0
          %s411 = smul.addr %s408, 4
          %s412 = scalar_lea.hbm %s5, %s411
          %s413 = sshll.u32 %s404, 4
          %s414 = int_to_ptr.vmem [resolvable:$true] %s413
          %s415 = sshll.u32 %s412, 4
          %s416 = int_to_ptr.hbm [resolvable:$true] %s415
          %421 = dma.vmem_to_hbm [thread:$0]  %s414, 128, %s416, %s401, 64, 64, 4
        $region44: #{_forward_jit.1} parent=39 // pred_fallthru
          _
      $region40: #{_forward_jit.1} parent=5 // pred_fallthru
        _
      %p422 = scmp.le.s32.totalorder 2, %s14
      // Predicated region
      $region45: #{_forward_jit.1} parent=5 // pred_check
        %p423 = pneg %p422
      $region46: #{_forward_jit.1} parent=5 // pred_check_branch
        %425 = sbr.rel (%p423) target = $region48
      $region47: #{_forward_jit.1} parent=5 // pred_region
        %s426 = ssub.s32 %s14, 2
        // Predicated region
        $region49: #{_forward_jit.1} parent=47 // pred_check
          %p427 = pneg %p153
        $region50: #{_forward_jit.1} parent=47 // pred_check_branch
          %429 = sbr.rel (%p427) target = $region52
        $region51: #{_forward_jit.1} parent=47 // pred_region
          %s430 = sand.u32 %s138, 1
          %s431 = scalar_lea.sflag [#allocation3], %s430
          %s432 = sand.u32 %s138, 1
          %s433 = smul.addr %s432, 8
          %s434 = scalar_lea.vmem [#allocation2], %s433
          %436 = dma.done %s431, 128
        $region52: #{_forward_jit.1} parent=47 // pred_fallthru
          _
      $region48: #{_forward_jit.1} parent=5 // pred_fallthru
        _
    $region6: #{_forward_jit.1} parent=1 // loop_footer
      %s18 = sadd.s32 1, %s14
    $region7: #{_forward_jit.1} parent=1 // loop_footer_branch
      %13 = sbr.rel target = $region3
    $region8: #{_forward_jit.1} parent=1 // loop_exit
      _
    %437 = vsyncpa [#allocation3], 1
    %s438 = scalar_lea.sflag [#allocation3], 1
    %439 = vsyncpa %s438, 1

</llo_original>
